<compile_context>
chip_gen: v7x
topology: tpu7x:2x2x1
jax: 0.10.0
libtpu: 0.0.40
codegen_flags: <defaults>
</compile_context>

<pallas_src>
from functools import partial

import jax
import jax.numpy as jnp
from jax.experimental import pallas as pl
from jax.experimental.pallas import tpu as pltpu

# ---- model sizes (small, TPU-tile-friendly analogues of the module defaults) ----
BATCH = 8        # batch_size   (PyTorch default 20)
D_IN = 128       # input_layer  (PyTorch default 120)
HIDDEN = 64      # hidden_layer (PyTorch default 100)
D_OUT = 8        # output_layer (PyTorch default 6)

LANE = 128       # TPU lane width; per-gate padded span and padded output width


def _round_up(x, m):
    return (x + m - 1) // m * m


def lstm_ae_kernel(x_ref, wih_ref, b_ref, wfc_ref, bfc_ref, out_ref, *, gp):
    """Fused single-step LSTM + Linear on one batch tile.

    x_ref   : (TILE_B, D_in)
    wih_ref : (D_in, 3*gp)   columns = [i-gate | g-gate | o-gate], each padded to gp lanes
    b_ref   : (1, 3*gp)      pre-summed b_ih + b_hh, same packing/padding
    wfc_ref : (gp, OUT_PAD)  fc weight, zero-padded rows/cols
    bfc_ref : (1, OUT_PAD)
    out_ref : (TILE_B, OUT_PAD)  lane-dense padded output
    """
    x = x_ref[...]                                                     # (B, D_in)

    gates = (jnp.dot(x, wih_ref[...], preferred_element_type=jnp.float32)
             + b_ref[...])                                             # (B, 3*gp)

    # Each slice is a full 128-lane-aligned span -> no cross-lane relayout.
    i = jax.nn.sigmoid(gates[:, 0 * gp:1 * gp])
    g = jnp.tanh(gates[:, 1 * gp:2 * gp])
    o = jax.nn.sigmoid(gates[:, 2 * gp:3 * gp])

    c = i * g                     # c0 == 0, f-gate dead
    h = o * jnp.tanh(c)           # padded lanes: sigmoid(0)*tanh(0) == 0

    out_ref[...] = (jnp.dot(h, wfc_ref[...], preferred_element_type=jnp.float32)
                    + bfc_ref[...]).astype(out_ref.dtype)              # (B, OUT_PAD)


def init_params(key, d_in, hidden, d_out):
    """Deterministic init mimicking PyTorch uniform(-1/sqrt(fan), 1/sqrt(fan))."""
    k_lstm = 1.0 / jnp.sqrt(hidden)
    k_fc = 1.0 / jnp.sqrt(hidden)
    keys = jax.random.split(key, 6)
    u = lambda k, shape, bound: jax.random.uniform(
        k, shape, jnp.float32, minval=-bound, maxval=bound)
    return {
        "w_ih": u(keys[0], (4 * hidden, d_in), k_lstm),   # PyTorch gate order i,f,g,o
        "w_hh": u(keys[1], (4 * hidden, hidden), k_lstm), # unused (h0 == 0), kept for fidelity
        "b_ih": u(keys[2], (4 * hidden,), k_lstm),
        "b_hh": u(keys[3], (4 * hidden,), k_lstm),
        "w_fc": u(keys[4], (d_out, hidden), k_fc),
        "b_fc": u(keys[5], (d_out,), k_fc),
    }


def prepare_params(params):
    """One-time repack: transpose, pre-sum biases, reorder/pad gates to 128-lane spans.

    Done once at init (NOT per forward call) so the forward pays zero eager
    transpose/pad HBM round trips.
    """
    H = params["w_hh"].shape[1]
    d_in = params["w_ih"].shape[1]
    d_out = params["w_fc"].shape[0]

    gp = _round_up(max(H, LANE), LANE)      # per-gate padded lane span (128 for H=64)
    out_pad = _round_up(max(d_out, LANE), LANE)

    w_ih = params["w_ih"]                   # (4H, d_in); rows [i | f | g | o]
    b_sum = params["b_ih"] + params["b_hh"] # (4H,)

    # Keep only the live gates (i, g, o) and pad each to a full 128-lane span.
    wih_t = jnp.zeros((d_in, 3 * gp), jnp.float32)
    b = jnp.zeros((1, 3 * gp), jnp.float32)
    for dst, src in enumerate((0, 2, 3)):   # dst slot <- PyTorch gate index (i, g, o)
        wih_t = wih_t.at[:, dst * gp:dst * gp + H].set(w_ih[src * H:(src + 1) * H, :].T)
        b = b.at[0, dst * gp:dst * gp + H].set(b_sum[src * H:(src + 1) * H])

    wfc_t = jnp.zeros((gp, out_pad), jnp.float32).at[:H, :d_out].set(params["w_fc"].T)
    bfc = jnp.zeros((1, out_pad), jnp.float32).at[0, :d_out].set(params["b_fc"])

    return {
        "w_ih_t": wih_t, "b": b, "w_fc_t": wfc_t, "b_fc": bfc,
        "gate_pad": gp, "out_pad": out_pad, "d_in": d_in, "d_out": d_out,
    }


def lstm_autoencoder_forward(x, prepared):
    """x: (B, D_in) float32 -> (B, D_out) float32 (matches output.squeeze())."""
    B, d_in = x.shape
    gp = prepared["gate_pad"]
    out_pad = prepared["out_pad"]
    d_out = prepared["d_out"]

    # Batch tiling: pipeline DMA over batch chunks; one tile covers small batches.
    tile_b = min(128, _round_up(B, 8))
    b_pad = _round_up(B, tile_b)
    if b_pad != B:
        x = jnp.pad(x, ((0, b_pad - B), (0, 0)))
    grid = (b_pad // tile_b,)

    out = pl.pallas_call(
        partial(lstm_ae_kernel, gp=gp),
        out_shape=jax.ShapeDtypeStruct((b_pad, out_pad), jnp.float32),
        grid=grid,
        in_specs=[
            pl.BlockSpec((tile_b, d_in), lambda i: (i, 0)),       # x: tiled over batch
            pl.BlockSpec((d_in, 3 * gp), lambda i: (0, 0)),       # weights: grid-invariant
            pl.BlockSpec((1, 3 * gp), lambda i: (0, 0)),
            pl.BlockSpec((gp, out_pad), lambda i: (0, 0)),
            pl.BlockSpec((1, out_pad), lambda i: (0, 0)),
        ],
        out_specs=pl.BlockSpec((tile_b, out_pad), lambda i: (i, 0)),
        compiler_params=pltpu.CompilerParams(
            dimension_semantics=("parallel",)),                   # shard batch across TCs (v7x)
    )(x, prepared["w_ih_t"], prepared["b"], prepared["w_fc_t"], prepared["b_fc"])

    return out[:B, :d_out]


def reference_forward(x, p):
    """Pure-JAX reference of the PyTorch forward (for correctness check)."""
    H = p["w_hh"].shape[1]
    gates = x @ p["w_ih"].T + p["b_ih"] + p["b_hh"]           # h0 == 0
    i = jax.nn.sigmoid(gates[:, 0 * H:1 * H])
    g = jnp.tanh(gates[:, 2 * H:3 * H])
    o = jax.nn.sigmoid(gates[:, 3 * H:4 * H])
    h = o * jnp.tanh(i * g)                                   # c0 == 0 (f-gate dead)
    return h @ p["w_fc"].T + p["b_fc"]


if __name__ == "__main__":
    key = jax.random.PRNGKey(0)
    k_param, k_x = jax.random.split(key)

    params = init_params(k_param, D_IN, HIDDEN, D_OUT)
    prepared = prepare_params(params)     # one-time weight repack (not per call)

    # Input corresponds to input_x of shape (B, input_layer); view(B,1,-1) is a no-op reshape.
    x = jax.random.normal(k_x, (BATCH, D_IN), jnp.float32)

    out = lstm_autoencoder_forward(x, prepared)
    out = jax.block_until_ready(out)

    ref = reference_forward(x, params)
    assert out.shape == (BATCH, D_OUT), out.shape
    assert jnp.allclose(out, ref, atol=1e-5, rtol=1e-5), "mismatch vs reference"

    print("KERNEL_OK")
</pallas_src>

<mosaic_0001>
module attributes {stable_mosaic.version = 11 : i64} {
  func.func @lstm_ae_kernel(%arg0: i32, %arg1: memref<8x128xf32, #tpu.memory_space<vmem>>, %arg2: memref<128x384xf32, #tpu.memory_space<vmem>>, %arg3: memref<1x384xf32, #tpu.memory_space<vmem>>, %arg4: memref<128x128xf32, #tpu.memory_space<vmem>>, %arg5: memref<1x128xf32, #tpu.memory_space<vmem>>, %arg6: memref<8x128xf32, #tpu.memory_space<vmem>>) attributes {dimension_semantics = [#tpu.dimension_semantics<parallel>], iteration_bounds = array<i64: 1>, scalar_prefetch = 0 : i64, scratch_operands = 0 : i64, tpu.core_type = #tpu.core_type<tc>, window_params = [{transform_indices = @transform_0, window_bounds = array<i64: 8, 128>}, {pipeline_mode = #tpu.pipeline_mode<synchronous>, transform_indices = @transform_1, window_bounds = array<i64: 128, 384>}, {pipeline_mode = #tpu.pipeline_mode<synchronous>, transform_indices = @transform_2, window_bounds = array<i64: 1, 384>}, {pipeline_mode = #tpu.pipeline_mode<synchronous>, transform_indices = @transform_3, window_bounds = array<i64: 128, 128>}, {pipeline_mode = #tpu.pipeline_mode<synchronous>, transform_indices = @transform_4, window_bounds = array<i64: 1, 128>}, {transform_indices = @transform_5, window_bounds = array<i64: 8, 128>}]} {
    %c0 = arith.constant 0 : index
    %c0_0 = arith.constant 0 : index
    %0 = vector.load %arg1[%c0, %c0_0] : memref<8x128xf32, #tpu.memory_space<vmem>>, vector<8x128xf32>
    %c0_1 = arith.constant 0 : index
    %c0_2 = arith.constant 0 : index
    %1 = vector.load %arg2[%c0_1, %c0_2] : memref<128x384xf32, #tpu.memory_space<vmem>>, vector<128x384xf32>
    %cst = arith.constant dense<0.000000e+00> : vector<8x384xf32>
    %2 = tpu.matmul %0, %1, %cst {dimension_numbers = #tpu.dot_dimension_numbers<[1], [0], [0], [1], [0, 0, 1, 1], [], []>} : vector<8x128xf32>, vector<128x384xf32>, vector<8x384xf32> -> vector<8x384xf32>
    %c0_3 = arith.constant 0 : index
    %c0_4 = arith.constant 0 : index
    %3 = vector.load %arg3[%c0_3, %c0_4] : memref<1x384xf32, #tpu.memory_space<vmem>>, vector<1x384xf32>
    %4 = vector.broadcast %3 : vector<1x384xf32> to vector<8x384xf32>
    %5 = arith.addf %2, %4 : vector<8x384xf32>
    %6 = vector.extract_strided_slice %5 {offsets = [0, 0], sizes = [8, 128], strides = [1, 1]} : vector<8x384xf32> to vector<8x128xf32>
    %7 = arith.negf %6 : vector<8x128xf32>
    %8 = math.exp %7 : vector<8x128xf32>
    %cst_5 = arith.constant 1.000000e+00 : f32
    %9 = vector.broadcast %cst_5 : f32 to vector<8x128xf32>
    %10 = arith.addf %9, %8 : vector<8x128xf32>
    %11 = arith.divf %9, %10 : vector<8x128xf32>
    %12 = vector.extract_strided_slice %5 {offsets = [0, 128], sizes = [8, 128], strides = [1, 1]} : vector<8x384xf32> to vector<8x128xf32>
    %13 = math.tanh %12 : vector<8x128xf32>
    %14 = vector.extract_strided_slice %5 {offsets = [0, 256], sizes = [8, 128], strides = [1, 1]} : vector<8x384xf32> to vector<8x128xf32>
    %15 = arith.negf %14 : vector<8x128xf32>
    %16 = math.exp %15 : vector<8x128xf32>
    %cst_6 = arith.constant 1.000000e+00 : f32
    %17 = vector.broadcast %cst_6 : f32 to vector<8x128xf32>
    %18 = arith.addf %17, %16 : vector<8x128xf32>
    %19 = arith.divf %17, %18 : vector<8x128xf32>
    %20 = arith.mulf %11, %13 : vector<8x128xf32>
    %21 = math.tanh %20 : vector<8x128xf32>
    %22 = arith.mulf %19, %21 : vector<8x128xf32>
    %c0_7 = arith.constant 0 : index
    %c0_8 = arith.constant 0 : index
    %23 = vector.load %arg4[%c0_7, %c0_8] : memref<128x128xf32, #tpu.memory_space<vmem>>, vector<128x128xf32>
    %cst_9 = arith.constant dense<0.000000e+00> : vector<8x128xf32>
    %24 = tpu.matmul %22, %23, %cst_9 {dimension_numbers = #tpu.dot_dimension_numbers<[1], [0], [0], [1], [0, 0, 1, 1], [], []>} : vector<8x128xf32>, vector<128x128xf32>, vector<8x128xf32> -> vector<8x128xf32>
    %c0_10 = arith.constant 0 : index
    %c0_11 = arith.constant 0 : index
    %25 = vector.load %arg5[%c0_10, %c0_11] : memref<1x128xf32, #tpu.memory_space<vmem>>, vector<1x128xf32>
    %26 = vector.broadcast %25 : vector<1x128xf32> to vector<8x128xf32>
    %27 = arith.addf %24, %26 : vector<8x128xf32>
    %c0_12 = arith.constant 0 : index
    %c0_13 = arith.constant 0 : index
    %28 = vector.load %arg6[%c0_12, %c0_13] : memref<8x128xf32, #tpu.memory_space<vmem>>, vector<8x128xf32>
    tpu.vector_store %arg6[%c0_12, %c0_13], %27 {strides = array<i32>} : memref<8x128xf32, #tpu.memory_space<vmem>>, vector<8x128xf32>,
    return
  }
  func.func @transform_0(%arg0: i32) -> (i32, i32) {
    %c0_i32 = arith.constant 0 : i32
    %c0_i32_0 = arith.constant 0 : i32
    return %arg0, %c0_i32 : i32, i32
  }
  func.func @transform_1(%arg0: i32) -> (i32, i32) {
    %c0_i32 = arith.constant 0 : i32
    %c0_i32_0 = arith.constant 0 : i32
    %c0_i32_1 = arith.constant 0 : i32
    return %c0_i32, %c0_i32_0 : i32, i32
  }
  func.func @transform_2(%arg0: i32) -> (i32, i32) {
    %c0_i32 = arith.constant 0 : i32
    %c0_i32_0 = arith.constant 0 : i32
    %c0_i32_1 = arith.constant 0 : i32
    return %c0_i32, %c0_i32_0 : i32, i32
  }
  func.func @transform_3(%arg0: i32) -> (i32, i32) {
    %c0_i32 = arith.constant 0 : i32
    %c0_i32_0 = arith.constant 0 : i32
    %c0_i32_1 = arith.constant 0 : i32
    return %c0_i32, %c0_i32_0 : i32, i32
  }
  func.func @transform_4(%arg0: i32) -> (i32, i32) {
    %c0_i32 = arith.constant 0 : i32
    %c0_i32_0 = arith.constant 0 : i32
    %c0_i32_1 = arith.constant 0 : i32
    return %c0_i32, %c0_i32_0 : i32, i32
  }
  func.func @transform_5(%arg0: i32) -> (i32, i32) {
    %c0_i32 = arith.constant 0 : i32
    %c0_i32_0 = arith.constant 0 : i32
    return %arg0, %c0_i32 : i32, i32
  }
}

</mosaic_0001>

<llo_original>
// kernel: tpu_custom_call.1
$region0: #{tpu_custom_call.1}
  #allocation0 [shape = 'u32[]', space=smem, size = 0x4, offset = 0x4, fixed_abs, tag = 'smem constant byte address 0x4 - core index']
  #allocation1 [shape = 'u32[144,128]{1,0:T(1,128)}', space=vmem, size = 0x12000, scoped, tag = 'internal scratch']
  %s0 = inlined_call_operand.hbm [shape: f32[8,128], index: 0, kind: input, shape index: {}]
  %s1 = inlined_call_operand.hbm [shape: f32[128,384], index: 1, kind: input, shape index: {}]
  %s2 = inlined_call_operand.vmem [shape: f32[1,384], index: 2, kind: input, shape index: {}]
  %s3 = inlined_call_operand.hbm [shape: f32[128,128], index: 3, kind: input, shape index: {}]
  %s4 = inlined_call_operand.vmem [shape: f32[1,128], index: 4, kind: input, shape index: {}]
  %s5 = inlined_call_operand.hbm [shape: f32[8,128], index: 5, kind: output, shape index: {}]
  %s6 = sld [smem:[#allocation0]]
  $region42: #{tpu_custom_call.1} parent=0
    _
  %s8 = ssub.s32 1, %s6
  %s9 = scalar_select 0, %s8, %s6
  $region1: #{tpu_custom_call.1} parent=0
    #allocation2 [shape = 'u8[4096]{0}', space=vmem, size = 0x1000, scoped, tag = 'input window, operand 0, single buffered']
    #allocation3 [shape = 's32[1]{0}', space=sflag, size = 0x4, scoped, tag = 'scoped memory for tpu_custom_call.1']
    #allocation4 [shape = 's32[1]{0}', space=sflag, size = 0x4, scoped, tag = 'scoped memory for tpu_custom_call.1']
    #allocation5 [shape = 'u8[196608]{0}', space=vmem, size = 0x30000, scoped, tag = 'input window, operand 1, single buffered']
    #allocation6 [shape = 's32[1]{0}', space=sflag, size = 0x4, scoped, tag = 'scoped memory for tpu_custom_call.1']
    #allocation7 [shape = 'u8[65536]{0}', space=vmem, size = 0x10000, scoped, tag = 'input window, operand 3, single buffered']
    #allocation8 [shape = 'u8[4096]{0}', space=vmem, size = 0x1000, scoped, tag = 'output window, operand 0, single buffered']
    %10 = vsyncpa [#allocation3], 0
    %11 = vsyncpa [#allocation6], 0
    %12 = vsyncpa [#allocation4], 0
    // Predicated region
    $region2: #{tpu_custom_call.1} parent=1 // pred_check
      _
    $region3: #{tpu_custom_call.1} parent=1 // pred_check_branch
      %14 = sbr.rel (0) target = $region5
    $region4: #{tpu_custom_call.1} parent=1 // pred_region
      %s16 = ssub.s32 128, 128
      %17 = vsyncadd [#allocation3], %s16
      %s19 = sshll.u32 [#allocation2], 4
      %s20 = int_to_ptr.vmem [resolvable:$true] %s19
      %22 = dma.hbm_to_vmem [thread:$0]  %s0, 128, %s20, [#allocation3]
    $region5: #{tpu_custom_call.1} parent=1 // pred_fallthru
      _
    // Predicated region
    $region6: #{tpu_custom_call.1} parent=1 // pred_check
      _
    $region7: #{tpu_custom_call.1} parent=1 // pred_check_branch
      %24 = sbr.rel (0) target = $region9
    $region8: #{tpu_custom_call.1} parent=1 // pred_region
      %s26 = ssub.s32 6144, 6144
      %27 = vsyncadd [#allocation6], %s26
      %s28 = sshll.u32 [#allocation5], 4
      %s29 = int_to_ptr.vmem [resolvable:$true] %s28
      %34 = dma.hbm_to_vmem [thread:$0]  %s1, 6144, %s29, [#allocation6], 384, 384, 24
    $region9: #{tpu_custom_call.1} parent=1 // pred_fallthru
      _
    // Predicated region
    $region10: #{tpu_custom_call.1} parent=1 // pred_check
      _
    $region11: #{tpu_custom_call.1} parent=1 // pred_check_branch
      %36 = sbr.rel (0) target = $region13
    $region12: #{tpu_custom_call.1} parent=1 // pred_region
      _
    $region13: #{tpu_custom_call.1} parent=1 // pred_fallthru
      _
    // Predicated region
    $region14: #{tpu_custom_call.1} parent=1 // pred_check
      _
    $region15: #{tpu_custom_call.1} parent=1 // pred_check_branch
      %38 = sbr.rel (0) target = $region17
    $region16: #{tpu_custom_call.1} parent=1 // pred_region
      %s40 = ssub.s32 2048, 2048
      %41 = vsyncadd [#allocation6], %s40
      %s42 = sshll.u32 [#allocation7], 4
      %s43 = int_to_ptr.vmem [resolvable:$true] %s42
      %48 = dma.hbm_to_vmem [thread:$0]  %s3, 2048, %s43, [#allocation6], 128, 128, 8
    $region17: #{tpu_custom_call.1} parent=1 // pred_fallthru
      _
    // Predicated region
    $region18: #{tpu_custom_call.1} parent=1 // pred_check
      _
    $region19: #{tpu_custom_call.1} parent=1 // pred_check_branch
      %50 = sbr.rel (0) target = $region21
    $region20: #{tpu_custom_call.1} parent=1 // pred_region
      _
    $region21: #{tpu_custom_call.1} parent=1 // pred_fallthru
      _
    // Predicated region
    $region22: #{tpu_custom_call.1} parent=1 // pred_check
      _
    $region23: #{tpu_custom_call.1} parent=1 // pred_check_branch
      %52 = sbr.rel (0) target = $region25
    $region24: #{tpu_custom_call.1} parent=1 // pred_region
      %53 = dma.done [#allocation3], 128
    $region25: #{tpu_custom_call.1} parent=1 // pred_fallthru
      _
    // Predicated region
    $region26: #{tpu_custom_call.1} parent=1 // pred_check
      _
    $region27: #{tpu_custom_call.1} parent=1 // pred_check_branch
      %55 = sbr.rel (0) target = $region29
    $region28: #{tpu_custom_call.1} parent=1 // pred_region
      %56 = dma.done [#allocation6], 6144
    $region29: #{tpu_custom_call.1} parent=1 // pred_fallthru
      _
    // Predicated region
    $region30: #{tpu_custom_call.1} parent=1 // pred_check
      _
    $region31: #{tpu_custom_call.1} parent=1 // pred_check_branch
      %58 = sbr.rel (0) target = $region33
    $region32: #{tpu_custom_call.1} parent=1 // pred_region
      %59 = dma.done [#allocation6], 2048
    $region33: #{tpu_custom_call.1} parent=1 // pred_fallthru
      _
    %v60 = vld [vmem:[#allocation2] sm:$0xff]
    %v61 = vld [vmem:[#allocation5] sm:$0xff]
    %v62 = vld [vmem:[#allocation5 + $0x8] sm:$0xff]
    %v63 = vld [vmem:[#allocation5 + $0x10] sm:$0xff]
    %v64 = vld [vmem:[#allocation5 + $0x18] sm:$0xff]
    %v65 = vld [vmem:[#allocation5 + $0x20] sm:$0xff]
    %v66 = vld [vmem:[#allocation5 + $0x28] sm:$0xff]
    %v67 = vld [vmem:[#allocation5 + $0x30] sm:$0xff]
    %v68 = vld [vmem:[#allocation5 + $0x38] sm:$0xff]
    %v69 = vld [vmem:[#allocation5 + $0x40] sm:$0xff]
    %v70 = vld [vmem:[#allocation5 + $0x48] sm:$0xff]
    %v71 = vld [vmem:[#allocation5 + $0x50] sm:$0xff]
    %v72 = vld [vmem:[#allocation5 + $0x58] sm:$0xff]
    %v73 = vld [vmem:[#allocation5 + $0x60] sm:$0xff]
    %v74 = vld [vmem:[#allocation5 + $0x68] sm:$0xff]
    %v75 = vld [vmem:[#allocation5 + $0x70] sm:$0xff]
    %v76 = vld [vmem:[#allocation5 + $0x78] sm:$0xff]
    %v77 = vld [vmem:[#allocation5 + $0x80] sm:$0xff]
    %v78 = vld [vmem:[#allocation5 + $0x88] sm:$0xff]
    %v79 = vld [vmem:[#allocation5 + $0x90] sm:$0xff]
    %v80 = vld [vmem:[#allocation5 + $0x98] sm:$0xff]
    %v81 = vld [vmem:[#allocation5 + $0xa0] sm:$0xff]
    %v82 = vld [vmem:[#allocation5 + $0xa8] sm:$0xff]
    %v83 = vld [vmem:[#allocation5 + $0xb0] sm:$0xff]
    %v84 = vld [vmem:[#allocation5 + $0xb8] sm:$0xff]
    %v85 = vld [vmem:[#allocation5 + $0xc0] sm:$0xff]
    %v86 = vld [vmem:[#allocation5 + $0xc8] sm:$0xff]
    %v87 = vld [vmem:[#allocation5 + $0xd0] sm:$0xff]
    %v88 = vld [vmem:[#allocation5 + $0xd8] sm:$0xff]
    %v89 = vld [vmem:[#allocation5 + $0xe0] sm:$0xff]
    %v90 = vld [vmem:[#allocation5 + $0xe8] sm:$0xff]
    %v91 = vld [vmem:[#allocation5 + $0xf0] sm:$0xff]
    %v92 = vld [vmem:[#allocation5 + $0xf8] sm:$0xff]
    %v93 = vld [vmem:[#allocation5 + $0x100] sm:$0xff]
    %v94 = vld [vmem:[#allocation5 + $0x108] sm:$0xff]
    %v95 = vld [vmem:[#allocation5 + $0x110] sm:$0xff]
    %v96 = vld [vmem:[#allocation5 + $0x118] sm:$0xff]
    %v97 = vld [vmem:[#allocation5 + $0x120] sm:$0xff]
    %v98 = vld [vmem:[#allocation5 + $0x128] sm:$0xff]
    %v99 = vld [vmem:[#allocation5 + $0x130] sm:$0xff]
    %v100 = vld [vmem:[#allocation5 + $0x138] sm:$0xff]
    %v101 = vld [vmem:[#allocation5 + $0x140] sm:$0xff]
    %v102 = vld [vmem:[#allocation5 + $0x148] sm:$0xff]
    %v103 = vld [vmem:[#allocation5 + $0x150] sm:$0xff]
    %v104 = vld [vmem:[#allocation5 + $0x158] sm:$0xff]
    %v105 = vld [vmem:[#allocation5 + $0x160] sm:$0xff]
    %v106 = vld [vmem:[#allocation5 + $0x168] sm:$0xff]
    %v107 = vld [vmem:[#allocation5 + $0x170] sm:$0xff]
    %v108 = vld [vmem:[#allocation5 + $0x178] sm:$0xff]
    %v109 = vld [vmem:[%s2] sm:$0x7]
    %v111 = vlaneseq
    %v112 = vshrl.u32 %v111, 7
    %v113 = vsub.s32 0, %v112
    %v114 = vrot.slane %v109, %v113
    %v115 = vlaneseq
    %v116 = vshrl.u32 %v115, 7
    %v117 = vsub.s32 1, %v116
    %v118 = vrot.slane %v109, %v117
    %v119 = vlaneseq
    %v120 = vshrl.u32 %v119, 7
    %v121 = vsub.s32 2, %v120
    %v122 = vrot.slane %v109, %v121
    %126 = vmatprep.subr.mxu0 %v62
    %127 = vmatpush1.msra.mxu0 %v61
    %128 = vmatprep.subr.mxu0 %v65
    %129 = vmatpush1.msra.mxu0 %v64
    %130 = vmatprep.subr.mxu0 %v68
    %131 = vmatpush1.msra.mxu0 %v67
    %132 = vmatprep.subr.mxu0 %v71
    %133 = vmatpush1.msra.mxu0 %v70
    %134 = vmatprep.subr.mxu0 %v74
    %135 = vmatpush1.msra.mxu0 %v73
    %136 = vmatprep.subr.mxu0 %v77
    %137 = vmatpush1.msra.mxu0 %v76
    %138 = vmatprep.subr.mxu0 %v80
    %139 = vmatpush1.msra.mxu0 %v79
    %140 = vmatprep.subr.mxu0 %v83
    %141 = vmatpush1.msra.mxu0 %v82
    %142 = vmatprep.subr.mxu0 %v86
    %143 = vmatpush1.msra.mxu0 %v85
    %144 = vmatprep.subr.mxu0 %v89
    %145 = vmatpush1.msra.mxu0 %v88
    %146 = vmatprep.subr.mxu0 %v92
    %147 = vmatpush1.msra.mxu0 %v91
    %148 = vmatprep.subr.mxu0 %v95
    %149 = vmatpush1.msra.mxu0 %v94
    %150 = vmatprep.subr.mxu0 %v98
    %151 = vmatpush1.msra.mxu0 %v97
    %152 = vmatprep.subr.mxu0 %v101
    %153 = vmatpush1.msra.mxu0 %v100
    %154 = vmatprep.subr.mxu0 %v104
    %155 = vmatpush1.msra.mxu0 %v103
    %156 = vmatprep.subr.mxu0 %v107
    %157 = vmatpush1.msra.mxu0 %v106
    %158 = vmatprep.subr.mxu0 0.0
    %159 = vmatpush1.msra.mxu0 0.0
    %160 = vmatprep.subr.mxu0 0.0
    %161 = vmatpush1.msra.mxu0 0.0
    %162 = vmatprep.subr.mxu0 0.0
    %163 = vmatpush1.msra.mxu0 0.0
    %164 = vmatprep.subr.mxu0 0.0
    %165 = vmatpush1.msra.mxu0 0.0
    %166 = vmatprep.subr.mxu0 0.0
    %167 = vmatpush1.msra.mxu0 0.0
    %168 = vmatprep.subr.mxu0 0.0
    %169 = vmatpush1.msra.mxu0 0.0
    %170 = vmatprep.subr.mxu0 0.0
    %171 = vmatpush1.msra.mxu0 0.0
    %172 = vmatprep.subr.mxu0 0.0
    %173 = vmatpush1.msra.mxu0 0.0
    %174 = vmatprep.subr.mxu0 0.0
    %175 = vmatpush1.msra.mxu0 0.0
    %176 = vmatprep.subr.mxu0 0.0
    %177 = vmatpush1.msra.mxu0 0.0
    %178 = vmatprep.subr.mxu0 0.0
    %179 = vmatpush1.msra.mxu0 0.0
    %180 = vmatprep.subr.mxu0 0.0
    %181 = vmatpush1.msra.mxu0 0.0
    %182 = vmatprep.subr.mxu0 0.0
    %183 = vmatpush1.msra.mxu0 0.0
    %184 = vmatprep.subr.mxu0 0.0
    %185 = vmatpush1.msra.mxu0 0.0
    %186 = vmatprep.subr.mxu0 0.0
    %187 = vmatpush1.msra.mxu0 0.0
    %188 = vmatprep.subr.mxu0 0.0
    %189 = vmatpush1.msra.mxu0 0.0
    %190 = vmatprep.mubr.f32.mxu0 0.0
    %191 = vmatmul.mubr.f32.gmra.mrb[0].mxu0 %v60
    %v192 = vpop.f32.mrb[0].mxu0
    %v193 = vadd.f32 %v114, %v192
    %v194 = vpop.f32.mrb[0].mxu0
    %v195 = vadd.f32 %v118, %v194
    %196 = vdwg.mxu0
    %197 = vmatprep.subr.mxu0 0.0
    %198 = vmatpush1.msra.mxu0 %v63
    %199 = vmatprep.subr.mxu0 0.0
    %200 = vmatpush1.msra.mxu0 %v66
    %201 = vmatprep.subr.mxu0 0.0
    %202 = vmatpush1.msra.mxu0 %v69
    %203 = vmatprep.subr.mxu0 0.0
    %204 = vmatpush1.msra.mxu0 %v72
    %205 = vmatprep.subr.mxu0 0.0
    %206 = vmatpush1.msra.mxu0 %v75
    %207 = vmatprep.subr.mxu0 0.0
    %208 = vmatpush1.msra.mxu0 %v78
    %209 = vmatprep.subr.mxu0 0.0
    %210 = vmatpush1.msra.mxu0 %v81
    %211 = vmatprep.subr.mxu0 0.0
    %212 = vmatpush1.msra.mxu0 %v84
    %213 = vmatprep.subr.mxu0 0.0
    %214 = vmatpush1.msra.mxu0 %v87
    %215 = vmatprep.subr.mxu0 0.0
    %216 = vmatpush1.msra.mxu0 %v90
    %217 = vmatprep.subr.mxu0 0.0
    %218 = vmatpush1.msra.mxu0 %v93
    %219 = vmatprep.subr.mxu0 0.0
    %220 = vmatpush1.msra.mxu0 %v96
    %221 = vmatprep.subr.mxu0 0.0
    %222 = vmatpush1.msra.mxu0 %v99
    %223 = vmatprep.subr.mxu0 0.0
    %224 = vmatpush1.msra.mxu0 %v102
    %225 = vmatprep.subr.mxu0 0.0
    %226 = vmatpush1.msra.mxu0 %v105
    %227 = vmatprep.subr.mxu0 0.0
    %228 = vmatpush1.msra.mxu0 %v108
    %229 = vmatprep.subr.mxu0 0.0
    %230 = vmatpush1.msra.mxu0 0.0
    %231 = vmatprep.subr.mxu0 0.0
    %232 = vmatpush1.msra.mxu0 0.0
    %233 = vmatprep.subr.mxu0 0.0
    %234 = vmatpush1.msra.mxu0 0.0
    %235 = vmatprep.subr.mxu0 0.0
    %236 = vmatpush1.msra.mxu0 0.0
    %237 = vmatprep.subr.mxu0 0.0
    %238 = vmatpush1.msra.mxu0 0.0
    %239 = vmatprep.subr.mxu0 0.0
    %240 = vmatpush1.msra.mxu0 0.0
    %241 = vmatprep.subr.mxu0 0.0
    %242 = vmatpush1.msra.mxu0 0.0
    %243 = vmatprep.subr.mxu0 0.0
    %244 = vmatpush1.msra.mxu0 0.0
    %245 = vmatprep.subr.mxu0 0.0
    %246 = vmatpush1.msra.mxu0 0.0
    %247 = vmatprep.subr.mxu0 0.0
    %248 = vmatpush1.msra.mxu0 0.0
    %249 = vmatprep.subr.mxu0 0.0
    %250 = vmatpush1.msra.mxu0 0.0
    %251 = vmatprep.subr.mxu0 0.0
    %252 = vmatpush1.msra.mxu0 0.0
    %253 = vmatprep.subr.mxu0 0.0
    %254 = vmatpush1.msra.mxu0 0.0
    %255 = vmatprep.subr.mxu0 0.0
    %256 = vmatpush1.msra.mxu0 0.0
    %257 = vmatprep.subr.mxu0 0.0
    %258 = vmatpush1.msra.mxu0 0.0
    %259 = vmatprep.subr.mxu0 0.0
    %260 = vmatpush1.msra.mxu0 0.0
    %261 = vmatprep.mubr.f32.mxu0 0.0
    %262 = vmatmul.mubr.f32.gmra.mrb[0].mxu0 %v60
    %v263 = vpop.f32.mrb[0].mxu0
    %v264 = vadd.f32 %v122, %v263
    %v265 = vpop.f32.mrb[0].mxu0
    %266 = vdwg.mxu0
    %v267 = vxor.u32 %v193, 2147483648
    %v268 = vmul.f32 %v267, 1.442695
    %v269 = vpow.pop %v268
    %v270 = vadd.f32 %v269, 1.0
    %v271 = vrcp.pop %v270
    %v272 = vmul.f32 1.0, %v271
    %v273 = vtanh.pop %v195
    %v274 = vxor.u32 %v264, 2147483648
    %v275 = vmul.f32 %v274, 1.442695
    %v276 = vpow.pop %v275
    %v277 = vadd.f32 %v276, 1.0
    %v278 = vrcp.pop %v277
    %v279 = vmul.f32 1.0, %v278
    %v280 = vmul.f32 %v272, %v273
    %v281 = vtanh.pop %v280
    %v282 = vmul.f32 %v279, %v281
    %v283 = vld [vmem:[#allocation7] sm:$0xff]
    %v284 = vld [vmem:[#allocation7 + $0x8] sm:$0xff]
    %v285 = vld [vmem:[#allocation7 + $0x10] sm:$0xff]
    %v286 = vld [vmem:[#allocation7 + $0x18] sm:$0xff]
    %v287 = vld [vmem:[#allocation7 + $0x20] sm:$0xff]
    %v288 = vld [vmem:[#allocation7 + $0x28] sm:$0xff]
    %v289 = vld [vmem:[#allocation7 + $0x30] sm:$0xff]
    %v290 = vld [vmem:[#allocation7 + $0x38] sm:$0xff]
    %v291 = vld [vmem:[#allocation7 + $0x40] sm:$0xff]
    %v292 = vld [vmem:[#allocation7 + $0x48] sm:$0xff]
    %v293 = vld [vmem:[#allocation7 + $0x50] sm:$0xff]
    %v294 = vld [vmem:[#allocation7 + $0x58] sm:$0xff]
    %v295 = vld [vmem:[#allocation7 + $0x60] sm:$0xff]
    %v296 = vld [vmem:[#allocation7 + $0x68] sm:$0xff]
    %v297 = vld [vmem:[#allocation7 + $0x70] sm:$0xff]
    %v298 = vld [vmem:[#allocation7 + $0x78] sm:$0xff]
    %v299 = vld [vmem:[%s4] sm:$0x1]
    %v301 = vlaneseq
    %v302 = vshrl.u32 %v301, 7
    %v303 = vsub.s32 0, %v302
    %v304 = vrot.slane %v299, %v303
    %306 = vmatprep.subr.mxu0 0.0
    %307 = vmatpush1.msra.mxu0 %v283
    %308 = vmatprep.subr.mxu0 0.0
    %309 = vmatpush1.msra.mxu0 %v284
    %310 = vmatprep.subr.mxu0 0.0
    %311 = vmatpush1.msra.mxu0 %v285
    %312 = vmatprep.subr.mxu0 0.0
    %313 = vmatpush1.msra.mxu0 %v286
    %314 = vmatprep.subr.mxu0 0.0
    %315 = vmatpush1.msra.mxu0 %v287
    %316 = vmatprep.subr.mxu0 0.0
    %317 = vmatpush1.msra.mxu0 %v288
    %318 = vmatprep.subr.mxu0 0.0
    %319 = vmatpush1.msra.mxu0 %v289
    %320 = vmatprep.subr.mxu0 0.0
    %321 = vmatpush1.msra.mxu0 %v290
    %322 = vmatprep.subr.mxu0 0.0
    %323 = vmatpush1.msra.mxu0 %v291
    %324 = vmatprep.subr.mxu0 0.0
    %325 = vmatpush1.msra.mxu0 %v292
    %326 = vmatprep.subr.mxu0 0.0
    %327 = vmatpush1.msra.mxu0 %v293
    %328 = vmatprep.subr.mxu0 0.0
    %329 = vmatpush1.msra.mxu0 %v294
    %330 = vmatprep.subr.mxu0 0.0
    %331 = vmatpush1.msra.mxu0 %v295
    %332 = vmatprep.subr.mxu0 0.0
    %333 = vmatpush1.msra.mxu0 %v296
    %334 = vmatprep.subr.mxu0 0.0
    %335 = vmatpush1.msra.mxu0 %v297
    %336 = vmatprep.subr.mxu0 0.0
    %337 = vmatpush1.msra.mxu0 %v298
    %338 = vmatprep.subr.mxu0 0.0
    %339 = vmatpush1.msra.mxu0 0.0
    %340 = vmatprep.subr.mxu0 0.0
    %341 = vmatpush1.msra.mxu0 0.0
    %342 = vmatprep.subr.mxu0 0.0
    %343 = vmatpush1.msra.mxu0 0.0
    %344 = vmatprep.subr.mxu0 0.0
    %345 = vmatpush1.msra.mxu0 0.0
    %346 = vmatprep.subr.mxu0 0.0
    %347 = vmatpush1.msra.mxu0 0.0
    %348 = vmatprep.subr.mxu0 0.0
    %349 = vmatpush1.msra.mxu0 0.0
    %350 = vmatprep.subr.mxu0 0.0
    %351 = vmatpush1.msra.mxu0 0.0
    %352 = vmatprep.subr.mxu0 0.0
    %353 = vmatpush1.msra.mxu0 0.0
    %354 = vmatprep.subr.mxu0 0.0
    %355 = vmatpush1.msra.mxu0 0.0
    %356 = vmatprep.subr.mxu0 0.0
    %357 = vmatpush1.msra.mxu0 0.0
    %358 = vmatprep.subr.mxu0 0.0
    %359 = vmatpush1.msra.mxu0 0.0
    %360 = vmatprep.subr.mxu0 0.0
    %361 = vmatpush1.msra.mxu0 0.0
    %362 = vmatprep.subr.mxu0 0.0
    %363 = vmatpush1.msra.mxu0 0.0
    %364 = vmatprep.subr.mxu0 0.0
    %365 = vmatpush1.msra.mxu0 0.0
    %366 = vmatprep.subr.mxu0 0.0
    %367 = vmatpush1.msra.mxu0 0.0
    %368 = vmatprep.subr.mxu0 0.0
    %369 = vmatpush1.msra.mxu0 0.0
    %370 = vmatprep.mubr.f32.mxu0 0.0
    %371 = vmatmul.mubr.f32.gmra.mrb[0].mxu0 %v282
    %v372 = vpop.f32.mrb[0].mxu0
    %v373 = vadd.f32 %v304, %v372
    %v374 = vpop.f32.mrb[0].mxu0
    %375 = vdwg.mxu0
    %376 = vst [vmem:[#allocation8] sm:$0xff] %v373
    // Predicated region
    $region34: #{tpu_custom_call.1} parent=1 // pred_check
      _
    $region35: #{tpu_custom_call.1} parent=1 // pred_check_branch
      %378 = sbr.rel (0) target = $region37
    $region36: #{tpu_custom_call.1} parent=1 // pred_region
      %s380 = ssub.s32 128, 128
      %381 = vsyncadd [#allocation4], %s380
      %s383 = sshll.u32 [#allocation8], 4
      %s384 = int_to_ptr.vmem [resolvable:$true] %s383
      %386 = dma.vmem_to_hbm [thread:$0]  %s384, 128, %s5, [#allocation4]
    $region37: #{tpu_custom_call.1} parent=1 // pred_fallthru
      _
    // Predicated region
    $region38: #{tpu_custom_call.1} parent=1 // pred_check
      _
    $region39: #{tpu_custom_call.1} parent=1 // pred_check_branch
      %388 = sbr.rel (0) target = $region41
    $region40: #{tpu_custom_call.1} parent=1 // pred_region
      %389 = dma.done [#allocation4], 128
    $region41: #{tpu_custom_call.1} parent=1 // pred_fallthru
      _
    %390 = vsyncpa [#allocation3], 1
    %391 = vsyncpa [#allocation6], 1
    %392 = vsyncpa [#allocation4], 1

</llo_original>
